<compile_context>
chip_gen: v7x
topology: tpu7x:2x2x1
jax: 0.10.0
libtpu: 0.0.40
codegen_flags: <defaults>
</compile_context>

<pallas_src>
import jax
import jax.numpy as jnp
from jax import lax
from jax.experimental import pallas as pl
from jax.experimental.pallas import tpu as pltpu

SUBLANE = 8
LANE = 128


def _critic_kernel(x_ref, w1_ref, b1_ref, w2_ref, b2_ref, w3t_ref, b3_ref, out_ref):
    # 3-layer MLP with f32 MXU accumulation.
    h1 = jnp.dot(x_ref[...], w1_ref[...], preferred_element_type=jnp.float32)
    h1 = jnp.maximum(h1 + b1_ref[...], 0.0)                     # ReLU, (bm, 256)
    h2 = jnp.dot(h1, w2_ref[...], preferred_element_type=jnp.float32)
    h2 = jnp.maximum(h2 + b2_ref[...], 0.0)                     # ReLU, (bm, 128)
    # Layer 3: contract h2's lane dim with the transposed w3 row -> (1, bm).
    # Result is already lane-dense over the batch, so the store is an unmasked
    # full-lane vst and no transpose / padded (bm,128) intermediate is needed.
    y = lax.dot_general(w3t_ref[...], h2,
                        dimension_numbers=(((1,), (1,)), ((), ())),
                        preferred_element_type=jnp.float32)     # (1, bm)
    out_ref[...] = (y + b3_ref[...]).astype(out_ref.dtype)


def _round_up(n, m):
    return ((n + m - 1) // m) * m


def _pad2d(a, rows, cols):
    a = jnp.asarray(a, jnp.float32)
    return jnp.pad(a, ((0, rows - a.shape[0]), (0, cols - a.shape[1])))


def prepare_params(params):
    """Pad weights/biases ONCE (hoisted out of the forward path).

    params: (w1, b1, w2, b2, w3, b3) with weights stored as (in, out).
    Returns lane/sublane-aligned params consumed by critic_forward.
    """
    w1, b1, w2, b2, w3, b3 = params
    kp = _round_up(w1.shape[0], SUBLANE)          # 6   -> 8   (sublane pad only)
    h1p = _round_up(w1.shape[1], LANE)            # 256 -> 256
    h2p = _round_up(w2.shape[1], LANE)            # 32  -> 128
    w1p = _pad2d(w1, kp, h1p)                                     # (8, 256)
    b1p = _pad2d(jnp.reshape(b1, (1, -1)), 1, h1p)                # (1, 256)
    w2p = _pad2d(w2, h1p, h2p)                                    # (256, 128)
    b2p = _pad2d(jnp.reshape(b2, (1, -1)), 1, h2p)                # (1, 128)
    w3t = _pad2d(jnp.transpose(jnp.asarray(w3, jnp.float32)), 1, h2p)  # (1, 128)
    b3p = jnp.reshape(jnp.asarray(b3, jnp.float32), (1, 1))       # (1, 1)
    return (w1p, b1p, w2p, b2p, w3t, b3p)


def _choose_batch_tiling(B, block_m):
    """Pick (bm, bp). Small batches -> one tile; large batches -> >=2 tiles of
    128-multiple rows so the (1, bm) output block stays lane-aligned and both
    v7x TensorCores get work."""
    if B <= 2 * LANE:
        bm = _round_up(max(B, SUBLANE), SUBLANE)
        return bm, bm
    half = _round_up(pl.cdiv(B, 2), LANE)
    bm = min(block_m, half)
    bp = _round_up(B, bm)
    return bm, bp


def critic_forward(env_feature, padded_params, *, block_m=2048):
    """env_feature: (B, 6) f32. padded_params: output of prepare_params()."""
    w1p, b1p, w2p, b2p, w3t, b3p = padded_params
    B, d_in = env_feature.shape
    kp = w1p.shape[0]                 # 8
    h1p = w1p.shape[1]                # 256
    h2p = w2p.shape[1]                # 128

    bm, bp = _choose_batch_tiling(B, block_m)

    # Only the activations are padded per call: feature dim 6 -> 8, batch -> bp.
    x = jnp.pad(env_feature.astype(jnp.float32), ((0, bp - B), (0, kp - d_in)))

    resident = lambda shape: pl.BlockSpec(shape, lambda i: (0, 0))

    out_row = pl.pallas_call(
        _critic_kernel,
        out_shape=jax.ShapeDtypeStruct((1, bp), jnp.float32),
        grid=(bp // bm,),
        in_specs=[
            pl.BlockSpec((bm, kp), lambda i: (i, 0)),   # activations: tiled over batch
            resident((kp, h1p)), resident((1, h1p)),    # w1, b1 (resident across grid)
            resident((h1p, h2p)), resident((1, h2p)),   # w2, b2
            resident((1, h2p)), resident((1, 1)),       # w3^T row, b3 scalar
        ],
        # Lane-dense (1, bm) row per tile -> unmasked stores, 4 B/row writeback.
        out_specs=pl.BlockSpec((1, bm), lambda i: (0, i)),
        compiler_params=pltpu.CompilerParams(
            dimension_semantics=("parallel",),          # shard batch tiles across TCs (v7x)
            vmem_limit_bytes=8 << 20,                   # working set is a few MiB
        ),
    )(x, w1p, b1p, w2p, b2p, w3t, b3p)

    # Narrow (B, 1) view taken at the XLA boundary, not inside the kernel.
    return out_row[0, :B].reshape(B, 1)


def init_params(key):
    """Deterministic synthetic parameters matching torch.nn.Linear(6,256)/(256,32)/(32,1),
    stored transposed as (in, out)."""
    dims = [(6, 256), (256, 32), (32, 1)]
    params = []
    for fan_in, fan_out in dims:
        key, kw, kb = jax.random.split(key, 3)
        bound = 1.0 / (fan_in ** 0.5)
        w = jax.random.uniform(kw, (fan_in, fan_out), jnp.float32, -bound, bound)
        b = jax.random.uniform(kb, (1, fan_out), jnp.float32, -bound, bound)
        params += [w, b]
    return tuple(params)


def _reference(env_feature, params):
    w1, b1, w2, b2, w3, b3 = params
    h1 = jnp.maximum(env_feature @ w1 + b1, 0.0)
    h2 = jnp.maximum(h1 @ w2 + b2, 0.0)
    return h2 @ w3 + b3


if __name__ == "__main__":
    key = jax.random.PRNGKey(0)
    k_feat, k_feat2, k_par = jax.random.split(key, 3)
    params = init_params(k_par)
    padded_params = prepare_params(params)   # pad weights once, not per forward

    # Small RL-step-sized batch (the module's natural input is (B, 6)).
    B = 2
    env_feature = jax.random.uniform(k_feat, (B, 6), jnp.float32)
    out = critic_forward(env_feature, padded_params)
    jax.block_until_ready(out)
    ref = _reference(env_feature, params)
    assert out.shape == (B, 1)
    assert jnp.allclose(out, ref, atol=1e-4, rtol=1e-4)

    # Multi-tile batch path (grid = 2: resident weights, v7x two-TC split).
    B2 = 300
    env_feature2 = jax.random.uniform(k_feat2, (B2, 6), jnp.float32)
    out2 = critic_forward(env_feature2, padded_params)
    jax.block_until_ready(out2)
    ref2 = _reference(env_feature2, params)
    assert out2.shape == (B2, 1)
    assert jnp.allclose(out2, ref2, atol=1e-4, rtol=1e-4)

    print("KERNEL_OK")
</pallas_src>

<mosaic_0001>
module attributes {stable_mosaic.version = 11 : i64} {
  func.func @_critic_kernel(%arg0: i32, %arg1: memref<8x8xf32, #tpu.memory_space<vmem>>, %arg2: memref<8x256xf32, #tpu.memory_space<vmem>>, %arg3: memref<1x256xf32, #tpu.memory_space<vmem>>, %arg4: memref<256x128xf32, #tpu.memory_space<vmem>>, %arg5: memref<1x128xf32, #tpu.memory_space<vmem>>, %arg6: memref<1x128xf32, #tpu.memory_space<vmem>>, %arg7: memref<1x1xf32, #tpu.memory_space<vmem>>, %arg8: memref<1x8xf32, #tpu.memory_space<vmem>>) attributes {dimension_semantics = [#tpu.dimension_semantics<parallel>], iteration_bounds = array<i64: 1>, scalar_prefetch = 0 : i64, scratch_operands = 0 : i64, tpu.core_type = #tpu.core_type<tc>, window_params = [{transform_indices = @transform_0, window_bounds = array<i64: 8, 8>}, {pipeline_mode = #tpu.pipeline_mode<synchronous>, transform_indices = @transform_1, window_bounds = array<i64: 8, 256>}, {pipeline_mode = #tpu.pipeline_mode<synchronous>, transform_indices = @transform_2, window_bounds = array<i64: 1, 256>}, {pipeline_mode = #tpu.pipeline_mode<synchronous>, transform_indices = @transform_3, window_bounds = array<i64: 256, 128>}, {pipeline_mode = #tpu.pipeline_mode<synchronous>, transform_indices = @transform_4, window_bounds = array<i64: 1, 128>}, {pipeline_mode = #tpu.pipeline_mode<synchronous>, transform_indices = @transform_5, window_bounds = array<i64: 1, 128>}, {pipeline_mode = #tpu.pipeline_mode<synchronous>, transform_indices = @transform_6, window_bounds = array<i64: 1, 1>}, {transform_indices = @transform_7, window_bounds = array<i64: 1, 8>}]} {
    %c0 = arith.constant 0 : index
    %c0_0 = arith.constant 0 : index
    %0 = vector.load %arg1[%c0, %c0_0] : memref<8x8xf32, #tpu.memory_space<vmem>>, vector<8x8xf32>
    %c0_1 = arith.constant 0 : index
    %c0_2 = arith.constant 0 : index
    %1 = vector.load %arg2[%c0_1, %c0_2] : memref<8x256xf32, #tpu.memory_space<vmem>>, vector<8x256xf32>
    %cst = arith.constant dense<0.000000e+00> : vector<8x256xf32>
    %2 = tpu.matmul %0, %1, %cst {dimension_numbers = #tpu.dot_dimension_numbers<[1], [0], [0], [1], [0, 0, 1, 1], [], []>} : vector<8x8xf32>, vector<8x256xf32>, vector<8x256xf32> -> vector<8x256xf32>
    %c0_3 = arith.constant 0 : index
    %c0_4 = arith.constant 0 : index
    %3 = vector.load %arg3[%c0_3, %c0_4] : memref<1x256xf32, #tpu.memory_space<vmem>>, vector<1x256xf32>
    %4 = vector.broadcast %3 : vector<1x256xf32> to vector<8x256xf32>
    %5 = arith.addf %2, %4 : vector<8x256xf32>
    %cst_5 = arith.constant 0.000000e+00 : f32
    %6 = vector.broadcast %cst_5 : f32 to vector<8x256xf32>
    %7 = arith.maximumf %5, %6 : vector<8x256xf32>
    %c0_6 = arith.constant 0 : index
    %c0_7 = arith.constant 0 : index
    %8 = vector.load %arg4[%c0_6, %c0_7] : memref<256x128xf32, #tpu.memory_space<vmem>>, vector<256x128xf32>
    %cst_8 = arith.constant dense<0.000000e+00> : vector<8x128xf32>
    %9 = tpu.matmul %7, %8, %cst_8 {dimension_numbers = #tpu.dot_dimension_numbers<[1], [0], [0], [1], [0, 0, 1, 1], [], []>} : vector<8x256xf32>, vector<256x128xf32>, vector<8x128xf32> -> vector<8x128xf32>
    %c0_9 = arith.constant 0 : index
    %c0_10 = arith.constant 0 : index
    %10 = vector.load %arg5[%c0_9, %c0_10] : memref<1x128xf32, #tpu.memory_space<vmem>>, vector<1x128xf32>
    %11 = vector.broadcast %10 : vector<1x128xf32> to vector<8x128xf32>
    %12 = arith.addf %9, %11 : vector<8x128xf32>
    %cst_11 = arith.constant 0.000000e+00 : f32
    %13 = vector.broadcast %cst_11 : f32 to vector<8x128xf32>
    %14 = arith.maximumf %12, %13 : vector<8x128xf32>
    %c0_12 = arith.constant 0 : index
    %c0_13 = arith.constant 0 : index
    %15 = vector.load %arg6[%c0_12, %c0_13] : memref<1x128xf32, #tpu.memory_space<vmem>>, vector<1x128xf32>
    %cst_14 = arith.constant dense<0.000000e+00> : vector<1x8xf32>
    %16 = tpu.matmul %15, %14, %cst_14 {dimension_numbers = #tpu.dot_dimension_numbers<[1], [1], [0], [0], [0, 0, 1, 0], [], []>} : vector<1x128xf32>, vector<8x128xf32>, vector<1x8xf32> -> vector<1x8xf32>
    %c0_15 = arith.constant 0 : index
    %c0_16 = arith.constant 0 : index
    %17 = vector.load %arg7[%c0_15, %c0_16] : memref<1x1xf32, #tpu.memory_space<vmem>>, vector<1x1xf32>
    %18 = vector.broadcast %17 : vector<1x1xf32> to vector<1x8xf32>
    %19 = arith.addf %16, %18 : vector<1x8xf32>
    %c0_17 = arith.constant 0 : index
    %c0_18 = arith.constant 0 : index
    %20 = vector.load %arg8[%c0_17, %c0_18] : memref<1x8xf32, #tpu.memory_space<vmem>>, vector<1x8xf32>
    tpu.vector_store %arg8[%c0_17, %c0_18], %19 {strides = array<i32>} : memref<1x8xf32, #tpu.memory_space<vmem>>, vector<1x8xf32>,
    return
  }
  func.func @transform_0(%arg0: i32) -> (i32, i32) {
    %c0_i32 = arith.constant 0 : i32
    %c0_i32_0 = arith.constant 0 : i32
    return %arg0, %c0_i32 : i32, i32
  }
  func.func @transform_1(%arg0: i32) -> (i32, i32) {
    %c0_i32 = arith.constant 0 : i32
    %c0_i32_0 = arith.constant 0 : i32
    %c0_i32_1 = arith.constant 0 : i32
    return %c0_i32, %c0_i32_0 : i32, i32
  }
  func.func @transform_2(%arg0: i32) -> (i32, i32) {
    %c0_i32 = arith.constant 0 : i32
    %c0_i32_0 = arith.constant 0 : i32
    %c0_i32_1 = arith.constant 0 : i32
    return %c0_i32, %c0_i32_0 : i32, i32
  }
  func.func @transform_3(%arg0: i32) -> (i32, i32) {
    %c0_i32 = arith.constant 0 : i32
    %c0_i32_0 = arith.constant 0 : i32
    %c0_i32_1 = arith.constant 0 : i32
    return %c0_i32, %c0_i32_0 : i32, i32
  }
  func.func @transform_4(%arg0: i32) -> (i32, i32) {
    %c0_i32 = arith.constant 0 : i32
    %c0_i32_0 = arith.constant 0 : i32
    %c0_i32_1 = arith.constant 0 : i32
    return %c0_i32, %c0_i32_0 : i32, i32
  }
  func.func @transform_5(%arg0: i32) -> (i32, i32) {
    %c0_i32 = arith.constant 0 : i32
    %c0_i32_0 = arith.constant 0 : i32
    %c0_i32_1 = arith.constant 0 : i32
    return %c0_i32, %c0_i32_0 : i32, i32
  }
  func.func @transform_6(%arg0: i32) -> (i32, i32) {
    %c0_i32 = arith.constant 0 : i32
    %c0_i32_0 = arith.constant 0 : i32
    %c0_i32_1 = arith.constant 0 : i32
    return %c0_i32, %c0_i32_0 : i32, i32
  }
  func.func @transform_7(%arg0: i32) -> (i32, i32) {
    %c0_i32 = arith.constant 0 : i32
    %c0_i32_0 = arith.constant 0 : i32
    return %c0_i32, %arg0 : i32, i32
  }
}

</mosaic_0001>

<llo_original>
// kernel: tpu_custom_call.1
$region0: #{tpu_custom_call.1}
  #allocation0 [shape = 'u32[]', space=smem, size = 0x4, offset = 0x4, fixed_abs, tag = 'smem constant byte address 0x4 - core index']
  #allocation1 [shape = 'u32[144,128]{1,0:T(1,128)}', space=vmem, size = 0x12000, scoped, tag = 'internal scratch']
  #allocation2 [shape = 'f32[1,1]{1,0:T(1,128)S(1)}', space=vmem, size = 0x200, scoped, tag = 'scoped memory for tpu_custom_call.1']
  %s0 = inlined_call_operand.hbm [shape: f32[8,8], index: 0, kind: input, shape index: {}]
  %s1 = inlined_call_operand.hbm [shape: f32[8,256], index: 1, kind: input, shape index: {}]
  %s2 = inlined_call_operand.vmem [shape: f32[1,256], index: 2, kind: input, shape index: {}]
  %s3 = inlined_call_operand.hbm [shape: f32[256,128], index: 3, kind: input, shape index: {}]
  %s4 = inlined_call_operand.vmem [shape: f32[1,128], index: 4, kind: input, shape index: {}]
  %s5 = inlined_call_operand.vmem [shape: f32[1,128], index: 5, kind: input, shape index: {}]
  %s6 = inlined_call_operand.<no memory space> [shape: f32[1,1], index: 6, kind: input, shape index: {}]
  %s7 = inlined_call_operand.hbm [shape: f32[1,8], index: 7, kind: output, shape index: {}]
  %s8 = sld [smem:[#allocation0]]
  $region50: #{tpu_custom_call.1} parent=0
    _
  %s10 = ssub.s32 1, %s8
  %s11 = scalar_select 0, %s10, %s8
  %v12 = vstv %s6
  %13 = vst [vmem:[#allocation2] sm:$0x1] %v12
  $region1: #{tpu_custom_call.1} parent=0
    #allocation3 [shape = 'u8[4096]{0}', space=vmem, size = 0x1000, scoped, tag = 'input window, operand 0, single buffered']
    #allocation4 [shape = 's32[1]{0}', space=sflag, size = 0x4, scoped, tag = 'scoped memory for tpu_custom_call.1']
    #allocation5 [shape = 's32[1]{0}', space=sflag, size = 0x4, scoped, tag = 'scoped memory for tpu_custom_call.1']
    #allocation6 [shape = 'u8[8192]{0}', space=vmem, size = 0x2000, scoped, tag = 'input window, operand 1, single buffered']
    #allocation7 [shape = 's32[1]{0}', space=sflag, size = 0x4, scoped, tag = 'scoped memory for tpu_custom_call.1']
    #allocation8 [shape = 'u8[131072]{0}', space=vmem, size = 0x20000, scoped, tag = 'input window, operand 3, single buffered']
    #allocation9 [shape = 'u8[512]{0}', space=vmem, size = 0x400, scoped, tag = 'output window, operand 0, single buffered']
    %14 = vsyncpa [#allocation4], 0
    %15 = vsyncpa [#allocation7], 0
    %16 = vsyncpa [#allocation5], 0
    // Predicated region
    $region2: #{tpu_custom_call.1} parent=1 // pred_check
      _
    $region3: #{tpu_custom_call.1} parent=1 // pred_check_branch
      %18 = sbr.rel (0) target = $region5
    $region4: #{tpu_custom_call.1} parent=1 // pred_region
      %s20 = ssub.s32 128, 128
      %21 = vsyncadd [#allocation4], %s20
      %s23 = sshll.u32 [#allocation3], 4
      %s24 = int_to_ptr.vmem [resolvable:$true] %s23
      %26 = dma.hbm_to_vmem [thread:$0]  %s0, 128, %s24, [#allocation4]
    $region5: #{tpu_custom_call.1} parent=1 // pred_fallthru
      _
    // Predicated region
    $region6: #{tpu_custom_call.1} parent=1 // pred_check
      _
    $region7: #{tpu_custom_call.1} parent=1 // pred_check_branch
      %28 = sbr.rel (0) target = $region9
    $region8: #{tpu_custom_call.1} parent=1 // pred_region
      %s30 = ssub.s32 256, 256
      %31 = vsyncadd [#allocation7], %s30
      %s33 = sshll.u32 [#allocation6], 4
      %s34 = int_to_ptr.vmem [resolvable:$true] %s33
      %36 = dma.hbm_to_vmem [thread:$0]  %s1, 256, %s34, [#allocation7]
    $region9: #{tpu_custom_call.1} parent=1 // pred_fallthru
      _
    // Predicated region
    $region10: #{tpu_custom_call.1} parent=1 // pred_check
      _
    $region11: #{tpu_custom_call.1} parent=1 // pred_check_branch
      %38 = sbr.rel (0) target = $region13
    $region12: #{tpu_custom_call.1} parent=1 // pred_region
      _
    $region13: #{tpu_custom_call.1} parent=1 // pred_fallthru
      _
    // Predicated region
    $region14: #{tpu_custom_call.1} parent=1 // pred_check
      _
    $region15: #{tpu_custom_call.1} parent=1 // pred_check_branch
      %40 = sbr.rel (0) target = $region17
    $region16: #{tpu_custom_call.1} parent=1 // pred_region
      %s42 = ssub.s32 4096, 4096
      %43 = vsyncadd [#allocation7], %s42
      %s44 = sshll.u32 [#allocation8], 4
      %s45 = int_to_ptr.vmem [resolvable:$true] %s44
      %50 = dma.hbm_to_vmem [thread:$0]  %s3, 4096, %s45, [#allocation7], 128, 128, 8
    $region17: #{tpu_custom_call.1} parent=1 // pred_fallthru
      _
    // Predicated region
    $region18: #{tpu_custom_call.1} parent=1 // pred_check
      _
    $region19: #{tpu_custom_call.1} parent=1 // pred_check_branch
      %52 = sbr.rel (0) target = $region21
    $region20: #{tpu_custom_call.1} parent=1 // pred_region
      _
    $region21: #{tpu_custom_call.1} parent=1 // pred_fallthru
      _
    // Predicated region
    $region22: #{tpu_custom_call.1} parent=1 // pred_check
      _
    $region23: #{tpu_custom_call.1} parent=1 // pred_check_branch
      %54 = sbr.rel (0) target = $region25
    $region24: #{tpu_custom_call.1} parent=1 // pred_region
      _
    $region25: #{tpu_custom_call.1} parent=1 // pred_fallthru
      _
    // Predicated region
    $region26: #{tpu_custom_call.1} parent=1 // pred_check
      _
    $region27: #{tpu_custom_call.1} parent=1 // pred_check_branch
      %56 = sbr.rel (0) target = $region29
    $region28: #{tpu_custom_call.1} parent=1 // pred_region
      _
    $region29: #{tpu_custom_call.1} parent=1 // pred_fallthru
      _
    // Predicated region
    $region30: #{tpu_custom_call.1} parent=1 // pred_check
      _
    $region31: #{tpu_custom_call.1} parent=1 // pred_check_branch
      %58 = sbr.rel (0) target = $region33
    $region32: #{tpu_custom_call.1} parent=1 // pred_region
      %59 = dma.done [#allocation4], 128
    $region33: #{tpu_custom_call.1} parent=1 // pred_fallthru
      _
    // Predicated region
    $region34: #{tpu_custom_call.1} parent=1 // pred_check
      _
    $region35: #{tpu_custom_call.1} parent=1 // pred_check_branch
      %61 = sbr.rel (0) target = $region37
    $region36: #{tpu_custom_call.1} parent=1 // pred_region
      %62 = dma.done [#allocation7], 256
    $region37: #{tpu_custom_call.1} parent=1 // pred_fallthru
      _
    // Predicated region
    $region38: #{tpu_custom_call.1} parent=1 // pred_check
      _
    $region39: #{tpu_custom_call.1} parent=1 // pred_check_branch
      %64 = sbr.rel (0) target = $region41
    $region40: #{tpu_custom_call.1} parent=1 // pred_region
      %65 = dma.done [#allocation7], 4096
    $region41: #{tpu_custom_call.1} parent=1 // pred_fallthru
      _
    %v66 = vld [vmem:[#allocation3] sm:$0xff]
    %v67 = vld [vmem:[#allocation6] sm:$0xff]
    %v68 = vld [vmem:[#allocation6 + $0x8] sm:$0xff]
    %v69 = vld [vmem:[%s2] sm:$0x3]
    %v71 = vlaneseq
    %v72 = vshrl.u32 %v71, 7
    %v73 = vsub.s32 0, %v72
    %v74 = vrot.slane %v69, %v73
    %v75 = vlaneseq
    %v76 = vshrl.u32 %v75, 7
    %v77 = vsub.s32 1, %v76
    %v78 = vrot.slane %v69, %v77
    %vm81 = vcmask 64512
    %v83 = vsel %vm81, %v66, 0
    %85 = vmatprep.subr.mxu0 %v68
    %86 = vmatpush1.msra.mxu0 %v67
    %87 = vmatprep.subr.mxu0 0.0
    %88 = vmatpush1.msra.mxu0 0.0
    %89 = vmatprep.subr.mxu0 0.0
    %90 = vmatpush1.msra.mxu0 0.0
    %91 = vmatprep.subr.mxu0 0.0
    %92 = vmatpush1.msra.mxu0 0.0
    %93 = vmatprep.subr.mxu0 0.0
    %94 = vmatpush1.msra.mxu0 0.0
    %95 = vmatprep.subr.mxu0 0.0
    %96 = vmatpush1.msra.mxu0 0.0
    %97 = vmatprep.subr.mxu0 0.0
    %98 = vmatpush1.msra.mxu0 0.0
    %99 = vmatprep.subr.mxu0 0.0
    %100 = vmatpush1.msra.mxu0 0.0
    %101 = vmatprep.subr.mxu0 0.0
    %102 = vmatpush1.msra.mxu0 0.0
    %103 = vmatprep.subr.mxu0 0.0
    %104 = vmatpush1.msra.mxu0 0.0
    %105 = vmatprep.subr.mxu0 0.0
    %106 = vmatpush1.msra.mxu0 0.0
    %107 = vmatprep.subr.mxu0 0.0
    %108 = vmatpush1.msra.mxu0 0.0
    %109 = vmatprep.subr.mxu0 0.0
    %110 = vmatpush1.msra.mxu0 0.0
    %111 = vmatprep.subr.mxu0 0.0
    %112 = vmatpush1.msra.mxu0 0.0
    %113 = vmatprep.subr.mxu0 0.0
    %114 = vmatpush1.msra.mxu0 0.0
    %115 = vmatprep.subr.mxu0 0.0
    %116 = vmatpush1.msra.mxu0 0.0
    %117 = vmatprep.subr.mxu0 0.0
    %118 = vmatpush1.msra.mxu0 0.0
    %119 = vmatprep.subr.mxu0 0.0
    %120 = vmatpush1.msra.mxu0 0.0
    %121 = vmatprep.subr.mxu0 0.0
    %122 = vmatpush1.msra.mxu0 0.0
    %123 = vmatprep.subr.mxu0 0.0
    %124 = vmatpush1.msra.mxu0 0.0
    %125 = vmatprep.subr.mxu0 0.0
    %126 = vmatpush1.msra.mxu0 0.0
    %127 = vmatprep.subr.mxu0 0.0
    %128 = vmatpush1.msra.mxu0 0.0
    %129 = vmatprep.subr.mxu0 0.0
    %130 = vmatpush1.msra.mxu0 0.0
    %131 = vmatprep.subr.mxu0 0.0
    %132 = vmatpush1.msra.mxu0 0.0
    %133 = vmatprep.subr.mxu0 0.0
    %134 = vmatpush1.msra.mxu0 0.0
    %135 = vmatprep.subr.mxu0 0.0
    %136 = vmatpush1.msra.mxu0 0.0
    %137 = vmatprep.subr.mxu0 0.0
    %138 = vmatpush1.msra.mxu0 0.0
    %139 = vmatprep.subr.mxu0 0.0
    %140 = vmatpush1.msra.mxu0 0.0
    %141 = vmatprep.subr.mxu0 0.0
    %142 = vmatpush1.msra.mxu0 0.0
    %143 = vmatprep.subr.mxu0 0.0
    %144 = vmatpush1.msra.mxu0 0.0
    %145 = vmatprep.subr.mxu0 0.0
    %146 = vmatpush1.msra.mxu0 0.0
    %147 = vmatprep.subr.mxu0 0.0
    %148 = vmatpush1.msra.mxu0 0.0
    %149 = vmatprep.mubr.f32.mxu0 0.0
    %150 = vmatmul.mubr.f32.gmra.mrb[0].mxu0 %v83
    %v151 = vpop.f32.mrb[0].mxu0
    %v152 = vadd.f32 %v74, %v151
    %v153 = vpop.f32.mrb[0].mxu0
    %v154 = vadd.f32 %v78, %v153
    %155 = vdwg.mxu0
    %v156 = vmax.f32 %v152, 0.0
    %v157 = vmax.f32 %v154, 0.0
    %v158 = vld [vmem:[#allocation8] sm:$0xff]
    %v159 = vld [vmem:[#allocation8 + $0x8] sm:$0xff]
    %v160 = vld [vmem:[#allocation8 + $0x10] sm:$0xff]
    %v161 = vld [vmem:[#allocation8 + $0x18] sm:$0xff]
    %v162 = vld [vmem:[#allocation8 + $0x20] sm:$0xff]
    %v163 = vld [vmem:[#allocation8 + $0x28] sm:$0xff]
    %v164 = vld [vmem:[#allocation8 + $0x30] sm:$0xff]
    %v165 = vld [vmem:[#allocation8 + $0x38] sm:$0xff]
    %v166 = vld [vmem:[#allocation8 + $0x40] sm:$0xff]
    %v167 = vld [vmem:[#allocation8 + $0x48] sm:$0xff]
    %v168 = vld [vmem:[#allocation8 + $0x50] sm:$0xff]
    %v169 = vld [vmem:[#allocation8 + $0x58] sm:$0xff]
    %v170 = vld [vmem:[#allocation8 + $0x60] sm:$0xff]
    %v171 = vld [vmem:[#allocation8 + $0x68] sm:$0xff]
    %v172 = vld [vmem:[#allocation8 + $0x70] sm:$0xff]
    %v173 = vld [vmem:[#allocation8 + $0x78] sm:$0xff]
    %v174 = vld [vmem:[#allocation8 + $0x80] sm:$0xff]
    %v175 = vld [vmem:[#allocation8 + $0x88] sm:$0xff]
    %v176 = vld [vmem:[#allocation8 + $0x90] sm:$0xff]
    %v177 = vld [vmem:[#allocation8 + $0x98] sm:$0xff]
    %v178 = vld [vmem:[#allocation8 + $0xa0] sm:$0xff]
    %v179 = vld [vmem:[#allocation8 + $0xa8] sm:$0xff]
    %v180 = vld [vmem:[#allocation8 + $0xb0] sm:$0xff]
    %v181 = vld [vmem:[#allocation8 + $0xb8] sm:$0xff]
    %v182 = vld [vmem:[#allocation8 + $0xc0] sm:$0xff]
    %v183 = vld [vmem:[#allocation8 + $0xc8] sm:$0xff]
    %v184 = vld [vmem:[#allocation8 + $0xd0] sm:$0xff]
    %v185 = vld [vmem:[#allocation8 + $0xd8] sm:$0xff]
    %v186 = vld [vmem:[#allocation8 + $0xe0] sm:$0xff]
    %v187 = vld [vmem:[#allocation8 + $0xe8] sm:$0xff]
    %v188 = vld [vmem:[#allocation8 + $0xf0] sm:$0xff]
    %v189 = vld [vmem:[#allocation8 + $0xf8] sm:$0xff]
    %v190 = vld [vmem:[%s4] sm:$0x1]
    %v192 = vlaneseq
    %v193 = vshrl.u32 %v192, 7
    %v194 = vsub.s32 0, %v193
    %v195 = vrot.slane %v190, %v194
    %197 = vmatprep.subr.mxu0 0.0
    %198 = vmatpush1.msra.mxu0 %v158
    %199 = vmatprep.subr.mxu0 0.0
    %200 = vmatpush1.msra.mxu0 %v159
    %201 = vmatprep.subr.mxu0 0.0
    %202 = vmatpush1.msra.mxu0 %v160
    %203 = vmatprep.subr.mxu0 0.0
    %204 = vmatpush1.msra.mxu0 %v161
    %205 = vmatprep.subr.mxu0 0.0
    %206 = vmatpush1.msra.mxu0 %v162
    %207 = vmatprep.subr.mxu0 0.0
    %208 = vmatpush1.msra.mxu0 %v163
    %209 = vmatprep.subr.mxu0 0.0
    %210 = vmatpush1.msra.mxu0 %v164
    %211 = vmatprep.subr.mxu0 0.0
    %212 = vmatpush1.msra.mxu0 %v165
    %213 = vmatprep.subr.mxu0 0.0
    %214 = vmatpush1.msra.mxu0 %v166
    %215 = vmatprep.subr.mxu0 0.0
    %216 = vmatpush1.msra.mxu0 %v167
    %217 = vmatprep.subr.mxu0 0.0
    %218 = vmatpush1.msra.mxu0 %v168
    %219 = vmatprep.subr.mxu0 0.0
    %220 = vmatpush1.msra.mxu0 %v169
    %221 = vmatprep.subr.mxu0 0.0
    %222 = vmatpush1.msra.mxu0 %v170
    %223 = vmatprep.subr.mxu0 0.0
    %224 = vmatpush1.msra.mxu0 %v171
    %225 = vmatprep.subr.mxu0 0.0
    %226 = vmatpush1.msra.mxu0 %v172
    %227 = vmatprep.subr.mxu0 0.0
    %228 = vmatpush1.msra.mxu0 %v173
    %229 = vmatprep.subr.mxu0 0.0
    %230 = vmatpush1.msra.mxu0 %v174
    %231 = vmatprep.subr.mxu0 0.0
    %232 = vmatpush1.msra.mxu0 %v175
    %233 = vmatprep.subr.mxu0 0.0
    %234 = vmatpush1.msra.mxu0 %v176
    %235 = vmatprep.subr.mxu0 0.0
    %236 = vmatpush1.msra.mxu0 %v177
    %237 = vmatprep.subr.mxu0 0.0
    %238 = vmatpush1.msra.mxu0 %v178
    %239 = vmatprep.subr.mxu0 0.0
    %240 = vmatpush1.msra.mxu0 %v179
    %241 = vmatprep.subr.mxu0 0.0
    %242 = vmatpush1.msra.mxu0 %v180
    %243 = vmatprep.subr.mxu0 0.0
    %244 = vmatpush1.msra.mxu0 %v181
    %245 = vmatprep.subr.mxu0 0.0
    %246 = vmatpush1.msra.mxu0 %v182
    %247 = vmatprep.subr.mxu0 0.0
    %248 = vmatpush1.msra.mxu0 %v183
    %249 = vmatprep.subr.mxu0 0.0
    %250 = vmatpush1.msra.mxu0 %v184
    %251 = vmatprep.subr.mxu0 0.0
    %252 = vmatpush1.msra.mxu0 %v185
    %253 = vmatprep.subr.mxu0 0.0
    %254 = vmatpush1.msra.mxu0 %v186
    %255 = vmatprep.subr.mxu0 0.0
    %256 = vmatpush1.msra.mxu0 %v187
    %257 = vmatprep.subr.mxu0 0.0
    %258 = vmatpush1.msra.mxu0 %v188
    %259 = vmatprep.subr.mxu0 0.0
    %260 = vmatpush1.msra.mxu0 %v189
    %261 = vmatprep.mubr.f32.mxu0 %v157
    %262 = vmatmul.mubr.f32.gmra.mrb[0].mxu0 %v156
    %v263 = vpop.f32.mrb[0].mxu0
    %v264 = vadd.f32 %v195, %v263
    %v265 = vpop.f32.mrb[0].mxu0
    %266 = vdwg.mxu0
    %v267 = vmax.f32 %v264, 0.0
    %v268 = vld [vmem:[%s5] sm:$0x1]
    %v269 = vld [vmem:[#allocation2] sm:$0x1]
    %271 = vset.pattern.permute.xlu0 0
    %272 = vperm.xlu0 %271, %v269
    %v273 = vpop.permute.xlu0 %272
    %v275 = vlaneseq
    %v276 = vshrl.u32 %v275, 7
    %v277 = vsub.s32 0, %v276
    %v278 = vrot.slane %v273, %v277
    %279 = vmatprep.subr.mxu0 0.0
    %280 = vmatpush1.xpose.msra.mxu0 %v267
    %281 = vmatprep.subr.mxu0 0.0
    %282 = vmatpush1.xpose.msra.mxu0 0.0
    %283 = vmatprep.subr.mxu0 0.0
    %284 = vmatpush1.xpose.msra.mxu0 0.0
    %285 = vmatprep.subr.mxu0 0.0
    %286 = vmatpush1.xpose.msra.mxu0 0.0
    %287 = vmatprep.subr.mxu0 0.0
    %288 = vmatpush1.xpose.msra.mxu0 0.0
    %289 = vmatprep.subr.mxu0 0.0
    %290 = vmatpush1.xpose.msra.mxu0 0.0
    %291 = vmatprep.subr.mxu0 0.0
    %292 = vmatpush1.xpose.msra.mxu0 0.0
    %293 = vmatprep.subr.mxu0 0.0
    %294 = vmatpush1.xpose.msra.mxu0 0.0
    %295 = vmatprep.subr.mxu0 0.0
    %296 = vmatpush1.xpose.msra.mxu0 0.0
    %297 = vmatprep.subr.mxu0 0.0
    %298 = vmatpush1.xpose.msra.mxu0 0.0
    %299 = vmatprep.subr.mxu0 0.0
    %300 = vmatpush1.xpose.msra.mxu0 0.0
    %301 = vmatprep.subr.mxu0 0.0
    %302 = vmatpush1.xpose.msra.mxu0 0.0
    %303 = vmatprep.subr.mxu0 0.0
    %304 = vmatpush1.xpose.msra.mxu0 0.0
    %305 = vmatprep.subr.mxu0 0.0
    %306 = vmatpush1.xpose.msra.mxu0 0.0
    %307 = vmatprep.subr.mxu0 0.0
    %308 = vmatpush1.xpose.msra.mxu0 0.0
    %309 = vmatprep.subr.mxu0 0.0
    %310 = vmatpush1.xpose.msra.mxu0 0.0
    %311 = vmatprep.subr.mxu0 0.0
    %312 = vmatpush1.xpose.msra.mxu0 0.0
    %313 = vmatprep.subr.mxu0 0.0
    %314 = vmatpush1.xpose.msra.mxu0 0.0
    %315 = vmatprep.subr.mxu0 0.0
    %316 = vmatpush1.xpose.msra.mxu0 0.0
    %317 = vmatprep.subr.mxu0 0.0
    %318 = vmatpush1.xpose.msra.mxu0 0.0
    %319 = vmatprep.subr.mxu0 0.0
    %320 = vmatpush1.xpose.msra.mxu0 0.0
    %321 = vmatprep.subr.mxu0 0.0
    %322 = vmatpush1.xpose.msra.mxu0 0.0
    %323 = vmatprep.subr.mxu0 0.0
    %324 = vmatpush1.xpose.msra.mxu0 0.0
    %325 = vmatprep.subr.mxu0 0.0
    %326 = vmatpush1.xpose.msra.mxu0 0.0
    %327 = vmatprep.subr.mxu0 0.0
    %328 = vmatpush1.xpose.msra.mxu0 0.0
    %329 = vmatprep.subr.mxu0 0.0
    %330 = vmatpush1.xpose.msra.mxu0 0.0
    %331 = vmatprep.subr.mxu0 0.0
    %332 = vmatpush1.xpose.msra.mxu0 0.0
    %333 = vmatprep.subr.mxu0 0.0
    %334 = vmatpush1.xpose.msra.mxu0 0.0
    %335 = vmatprep.subr.mxu0 0.0
    %336 = vmatpush1.xpose.msra.mxu0 0.0
    %337 = vmatprep.subr.mxu0 0.0
    %338 = vmatpush1.xpose.msra.mxu0 0.0
    %339 = vmatprep.subr.mxu0 0.0
    %340 = vmatpush1.xpose.msra.mxu0 0.0
    %341 = vmatprep.subr.mxu0 0.0
    %342 = vmatpush1.xpose.msra.mxu0 0.0
    %343 = vmatprep.mubr.f32.mxu0 0.0
    %344 = vmatmul.mubr.f32.gmra.mrb[0].mxu0 %v268
    %v345 = vpop.f32.mrb[0].mxu0
    %v346 = vadd.f32 %v278, %v345
    %v347 = vpop.f32.mrb[0].mxu0
    %348 = vdwg.mxu0
    %vm349 = vcmask 57344
    %350 = vst.msk [vmem:[#allocation9] sm:$0x1] %vm349, %v346
    // Predicated region
    $region42: #{tpu_custom_call.1} parent=1 // pred_check
      _
    $region43: #{tpu_custom_call.1} parent=1 // pred_check_branch
      %352 = sbr.rel (0) target = $region45
    $region44: #{tpu_custom_call.1} parent=1 // pred_region
      %s354 = ssub.s32 16, 16
      %355 = vsyncadd [#allocation5], %s354
      %s357 = sshll.u32 [#allocation9], 4
      %s358 = int_to_ptr.vmem [resolvable:$true] %s357
      %360 = dma.vmem_to_hbm [thread:$0]  %s358, 16, %s7, [#allocation5]
    $region45: #{tpu_custom_call.1} parent=1 // pred_fallthru
      _
    // Predicated region
    $region46: #{tpu_custom_call.1} parent=1 // pred_check
      _
    $region47: #{tpu_custom_call.1} parent=1 // pred_check_branch
      %362 = sbr.rel (0) target = $region49
    $region48: #{tpu_custom_call.1} parent=1 // pred_region
      %363 = dma.done [#allocation5], 16
    $region49: #{tpu_custom_call.1} parent=1 // pred_fallthru
      _
    %364 = vsyncpa [#allocation4], 1
    %365 = vsyncpa [#allocation7], 1
    %366 = vsyncpa [#allocation5], 1

</llo_original>
